<compile_context>
chip_gen: v7x
topology: tpu7x:2x2x1
jax: 0.10.0
libtpu: 0.0.40
codegen_flags: <defaults>
</compile_context>

<pallas_src>
import functools

import jax
import jax.numpy as jnp
from jax.experimental import pallas as pl
from jax.experimental.pallas import tpu as pltpu
import numpy as np


def _gelu_tanh(x):
    # GELU with tanh approximation (matches nn.GELU(approximate='tanh'))
    c = jnp.float32(0.7978845608028654)  # sqrt(2/pi)
    return 0.5 * x * (1.0 + jnp.tanh(c * (x + 0.044715 * x * x * x)))


def _round_up(x, m):
    return ((x + m - 1) // m) * m


def ln_mlp_kernel(x_ref, g_ref, b_ref, w1_ref, b1_ref, w2_ref, b2_ref,
                  o_ref, y_sc, acc_sc, *, h_real, eps, mxu_dtype):
    f = pl.program_id(1)
    nf = pl.num_programs(1)

    # ---- LayerNorm (fp32, two-pass centered variance), once per row tile ----
    @pl.when(f == 0)
    def _():
        x = x_ref[...].astype(jnp.float32)                 # (tm, H_pad)
        inv_h = jnp.float32(1.0 / h_real)
        # padded lanes of x are zero, so the plain sum is already exact
        mu = jnp.sum(x, axis=-1, keepdims=True) * inv_h    # (tm, 1)
        xc = x - mu
        if x.shape[-1] != h_real:
            # mask padded lanes so they do not pollute the variance
            lane = jax.lax.broadcasted_iota(jnp.int32, x.shape, dimension=1)
            xc = jnp.where(lane < h_real, xc, 0.0)
        var = jnp.sum(xc * xc, axis=-1, keepdims=True) * inv_h
        y = xc * jax.lax.rsqrt(var + jnp.float32(eps))
        # padded gamma/beta are zero -> padded lanes of y stay zero
        y = y * g_ref[...].astype(jnp.float32) + b_ref[...].astype(jnp.float32)
        # store once in MXU dtype (bf16) -> no per-F-step recast of the scratch
        y_sc[...] = y.astype(y_sc.dtype)

    # ---- fc1 block: y @ w1[:, f-block] + b1[f-block]  (MXU, f32 acc) ----
    h = jnp.dot(y_sc[...], w1_ref[...], preferred_element_type=jnp.float32)
    h = h + b1_ref[...].astype(jnp.float32)                # (tm, tf)

    # ---- activation: GELU (tanh approx), fp32 on the VPU/EUP ----
    t = _gelu_tanh(h)

    # ---- fc2 partial: t @ w2[f-block, :] -> fp32 accumulator ----
    fc2_partial = jnp.dot(t.astype(mxu_dtype), w2_ref[...],
                          preferred_element_type=jnp.float32)   # (tm, H_pad)

    @pl.when(f == 0)
    def _():
        acc_sc[...] = fc2_partial                          # no zero-fill + RMW

    @pl.when(f != 0)
    def _():
        acc_sc[...] += fc2_partial

    @pl.when(f == nf - 1)
    def _():
        o_ref[...] = (acc_sc[...] + b2_ref[...].astype(jnp.float32)
                      ).astype(o_ref.dtype)


def _vmem_estimate(tm, tf, H_pad, x_bytes, out_bytes, wbytes, ybytes):
    """Estimated VMEM footprint (double-buffered streamed tiles + scratch)."""
    return (
        2 * tm * H_pad * x_bytes                # x tile (double-buffered)
        + 2 * H_pad * tf * wbytes               # w1 F-block tile
        + 2 * tf * H_pad * wbytes               # w2 F-block tile
        + 2 * (tf + 3 * H_pad) * 4              # b1 / b2 / gamma / beta
        + tm * H_pad * ybytes                   # LN-output scratch (mxu dtype)
        + tm * H_pad * 4                        # fp32 fc2 accumulator
        + 2 * tm * H_pad * out_bytes            # output tile (double-buffered)
        + 2 * tm * tf * 4                       # fc1/GELU intermediate headroom
    )


def layernorm_mlp(x, ln_gamma, ln_beta, w1, b1, w2, b2, *,
                  eps=1e-5, tile_rows=None, tile_ffn=None,
                  mxu_dtype=jnp.bfloat16):
    """x: [..., H].  w1: [H, F], w2: [F, H] (pre-transposed).  Returns [..., H]."""
    orig_shape = x.shape
    H = orig_shape[-1]
    x2 = x.reshape(-1, H)
    N = x2.shape[0]
    F = w1.shape[1]

    # ---- per-generation VMEM budget (auto-derived, safe fallback) ----
    try:
        vmem_cap = int(pltpu.get_tpu_info().vmem_capacity_bytes)
    except Exception:
        vmem_cap = 128 << 20
    small_vmem = vmem_cap <= (64 << 20)           # e.g. v7x: 64 MiB per TC
    budget = int(vmem_cap * (0.75 if small_vmem else 0.80))

    wbytes = jnp.dtype(mxu_dtype).itemsize
    ybytes = wbytes                               # LN scratch stored in mxu dtype
    x_bytes = x2.dtype.itemsize
    out_bytes = x2.dtype.itemsize

    # ---- tiling / padding (lane-dense: H, F padded to multiples of 128) ----
    H_pad = _round_up(H, 128)
    if tile_ffn is None:
        tile_ffn = 256 if small_vmem else 512
    tf = max(128, min(_round_up(tile_ffn, 128), _round_up(F, 128)))
    F_pad = _round_up(F, tf)
    nf = F_pad // tf

    row_cap = _round_up(N, 8)
    if tile_rows is not None:
        tm_cands = [max(8, min(_round_up(tile_rows, 8), row_cap))]
    else:
        base = ([512, 384, 256, 128, 64, 32, 16, 8] if small_vmem
                else [768, 512, 384, 256, 128, 64, 32, 16, 8])
        tm_cands = [min(t, row_cap) for t in base]
    tm = 8
    for cand in tm_cands:
        if _vmem_estimate(cand, tf, H_pad, x_bytes, out_bytes,
                          wbytes, ybytes) <= budget:
            tm = cand
            break
    tm = max(8, tm)
    N_pad = _round_up(N, tm)

    est = _vmem_estimate(tm, tf, H_pad, x_bytes, out_bytes, wbytes, ybytes)
    vmem_limit = int(min(max(budget, est + (4 << 20)), vmem_cap))

    # zero-padding is numerically safe:
    #  * padded x lanes are masked out of the LN statistics in-kernel
    #  * padded w1 rows / b1 cols / w2 rows / w2 cols / b2 cols are zero, so
    #    padded F columns contribute gelu(0)=0 * 0 and padded H outputs are 0
    xp = jnp.pad(x2, ((0, N_pad - N), (0, H_pad - H)))
    g = jnp.pad(ln_gamma.reshape(1, -1).astype(jnp.float32),
                ((0, 0), (0, H_pad - H)))
    bln = jnp.pad(ln_beta.reshape(1, -1).astype(jnp.float32),
                  ((0, 0), (0, H_pad - H)))
    w1p = jnp.pad(w1, ((0, H_pad - H), (0, F_pad - F))).astype(mxu_dtype)
    b1p = jnp.pad(b1.reshape(1, -1).astype(jnp.float32),
                  ((0, 0), (0, F_pad - F)))
    w2p = jnp.pad(w2, ((0, F_pad - F), (0, H_pad - H))).astype(mxu_dtype)
    b2p = jnp.pad(b2.reshape(1, -1).astype(jnp.float32),
                  ((0, 0), (0, H_pad - H)))

    grid = (N_pad // tm, nf)   # reduction (F) axis last / innermost

    # serpentine F traversal: odd row tiles walk F blocks in reverse so the
    # weight tile at the row-tile boundary is already resident (no cold DMA).
    def _ser(i, f):
        return f + (i % 2) * ((nf - 1) - 2 * f)

    kernel = functools.partial(ln_mlp_kernel, h_real=H, eps=float(eps),
                               mxu_dtype=mxu_dtype)

    # ---- advisory cost estimate: weights are re-streamed once per row tile ----
    n_row_tiles = N_pad // tm
    flops = 4 * N_pad * H_pad * F_pad             # two matmuls
    bytes_accessed = int(
        xp.size * xp.dtype.itemsize
        + n_row_tiles * (w1p.size * w1p.dtype.itemsize
                         + w2p.size * w2p.dtype.itemsize)
        + N_pad * H_pad * out_bytes
        + (g.size + bln.size + b1p.size + b2p.size) * 4)
    cost = pl.CostEstimate(flops=flops, transcendentals=N_pad * F_pad,
                           bytes_accessed=bytes_accessed)

    out = pl.pallas_call(
        kernel,
        out_shape=jax.ShapeDtypeStruct((N_pad, H_pad), x2.dtype),
        grid_spec=pltpu.PrefetchScalarGridSpec(
            num_scalar_prefetch=0,
            grid=grid,
            in_specs=[
                pl.BlockSpec((tm, H_pad), lambda i, f: (i, 0)),       # x row tile
                pl.BlockSpec((1, H_pad), lambda i, f: (0, 0)),        # ln gamma
                pl.BlockSpec((1, H_pad), lambda i, f: (0, 0)),        # ln beta
                pl.BlockSpec((H_pad, tf), lambda i, f: (0, _ser(i, f))),  # w1
                pl.BlockSpec((1, tf), lambda i, f: (0, _ser(i, f))),      # b1
                pl.BlockSpec((tf, H_pad), lambda i, f: (_ser(i, f), 0)),  # w2
                pl.BlockSpec((1, H_pad), lambda i, f: (0, 0)),        # b2
            ],
            out_specs=pl.BlockSpec((tm, H_pad), lambda i, f: (i, 0)),
            scratch_shapes=[
                pltpu.VMEM((tm, H_pad), mxu_dtype),     # LN output (reused over F)
                pltpu.VMEM((tm, H_pad), jnp.float32),   # fc2 accumulator
            ],
        ),
        compiler_params=pltpu.CompilerParams(
            dimension_semantics=("parallel", "arbitrary"),
            vmem_limit_bytes=vmem_limit),
        cost_estimate=cost,
    )(xp, g, bln, w1p, b1p, w2p, b2p)

    return out[:N, :H].reshape(orig_shape)


def reference(x, ln_gamma, ln_beta, w1, b1, w2, b2, eps=1e-5,
              mxu_dtype=jnp.float32):
    """Pure-JAX reference; mxu_dtype emulates the kernel's MXU-input cast."""
    xf = x.astype(jnp.float32)
    mu = jnp.mean(xf, axis=-1, keepdims=True)
    xc = xf - mu
    var = jnp.mean(xc * xc, axis=-1, keepdims=True)
    y = xc * jax.lax.rsqrt(var + eps) * ln_gamma.reshape(1, -1) \
        + ln_beta.reshape(1, -1)
    y = y.astype(mxu_dtype).astype(jnp.float32)
    w1c = w1.astype(mxu_dtype).astype(jnp.float32)
    w2c = w2.astype(mxu_dtype).astype(jnp.float32)
    h = y @ w1c + b1.reshape(1, -1)
    t = _gelu_tanh(h).astype(mxu_dtype).astype(jnp.float32)
    return t @ w2c + b2.reshape(1, -1)


if __name__ == "__main__":
    # Small shapes consistent with TorchLayerNormMLP forward:
    #   hidden_size H = 32, ffn_hidden_size F = 64, batch = 2, seq = 8
    batch, seq, H, F = 2, 8, 32, 64
    N = batch * seq

    key = jax.random.PRNGKey(0)
    kx, kw1, kb1, kw2, kb2 = jax.random.split(key, 5)

    x = jax.random.normal(kx, (batch, seq, H), dtype=jnp.float32)

    # LayerNorm params (deterministic, non-trivial so the path is exercised).
    ln_gamma = 1.0 + 0.1 * jnp.arange(H, dtype=jnp.float32)
    ln_beta = 0.05 * jnp.arange(H, dtype=jnp.float32)

    # Linear layers: torch nn.Linear stores W as (out, in); we pre-transpose.
    bound1 = 1.0 / np.sqrt(H)
    bound2 = 1.0 / np.sqrt(F)
    w1 = jax.random.uniform(kw1, (H, F), jnp.float32, -bound1, bound1)
    b1 = jax.random.uniform(kb1, (F,), jnp.float32, -bound1, bound1)
    w2 = jax.random.uniform(kw2, (F, H), jnp.float32, -bound2, bound2)
    b2 = jax.random.uniform(kb2, (H,), jnp.float32, -bound2, bound2)

    x2 = x.reshape(-1, H)

    # ---- fp32 MXU path: numerics check against the fp32 reference ----
    out_f32 = layernorm_mlp(x, ln_gamma, ln_beta, w1, b1, w2, b2,
                            mxu_dtype=jnp.float32)
    out_f32 = jax.block_until_ready(out_f32)
    ref_f32 = reference(x2, ln_gamma, ln_beta, w1, b1, w2, b2,
                        mxu_dtype=jnp.float32).reshape(x.shape)
    np.testing.assert_allclose(np.asarray(out_f32), np.asarray(ref_f32),
                               rtol=1e-4, atol=1e-4)

    # ---- bf16 MXU path (default / fast): check vs bf16-aware reference ----
    out_bf16 = layernorm_mlp(x, ln_gamma, ln_beta, w1, b1, w2, b2,
                             mxu_dtype=jnp.bfloat16)
    out_bf16 = jax.block_until_ready(out_bf16)
    ref_bf16 = reference(x2, ln_gamma, ln_beta, w1, b1, w2, b2,
                         mxu_dtype=jnp.bfloat16).reshape(x.shape)
    np.testing.assert_allclose(np.asarray(out_bf16), np.asarray(ref_bf16),
                               rtol=3e-3, atol=3e-3)

    print("KERNEL_OK")
</pallas_src>

<mosaic_0001>
module attributes {stable_mosaic.version = 11 : i64} {
  func.func @ln_mlp_kernel(%arg0: i32, %arg1: i32, %arg2: memref<16x128xf32, #tpu.memory_space<vmem>>, %arg3: memref<1x128xf32, #tpu.memory_space<vmem>>, %arg4: memref<1x128xf32, #tpu.memory_space<vmem>>, %arg5: memref<128x128xf32, #tpu.memory_space<vmem>>, %arg6: memref<1x128xf32, #tpu.memory_space<vmem>>, %arg7: memref<128x128xf32, #tpu.memory_space<vmem>>, %arg8: memref<1x128xf32, #tpu.memory_space<vmem>>, %arg9: memref<16x128xf32, #tpu.memory_space<vmem>>, %arg10: memref<16x128xf32, #tpu.memory_space<vmem>>, %arg11: memref<16x128xf32, #tpu.memory_space<vmem>>) attributes {dimension_semantics = [#tpu.dimension_semantics<parallel>, #tpu.dimension_semantics<arbitrary>], iteration_bounds = array<i64: 1, 1>, scalar_prefetch = 0 : i64, scratch_operands = 2 : i64, tpu.core_type = #tpu.core_type<tc>, window_params = [{transform_indices = @transform_0, window_bounds = array<i64: 16, 128>}, {pipeline_mode = #tpu.pipeline_mode<synchronous>, transform_indices = @transform_1, window_bounds = array<i64: 1, 128>}, {pipeline_mode = #tpu.pipeline_mode<synchronous>, transform_indices = @transform_2, window_bounds = array<i64: 1, 128>}, {transform_indices = @transform_3, window_bounds = array<i64: 128, 128>}, {transform_indices = @transform_4, window_bounds = array<i64: 1, 128>}, {transform_indices = @transform_5, window_bounds = array<i64: 128, 128>}, {pipeline_mode = #tpu.pipeline_mode<synchronous>, transform_indices = @transform_6, window_bounds = array<i64: 1, 128>}, {transform_indices = @transform_7, window_bounds = array<i64: 16, 128>}]} {
    %c0_i32 = arith.constant 0 : i32
    %0 = arith.cmpi eq, %arg1, %c0_i32 : i32
    %1 = arith.extui %0 : i1 to i32
    %c0_i32_0 = arith.constant 0 : i32
    %2 = arith.cmpi ne, %1, %c0_i32_0 : i32
    scf.if %2 {
      %c0_19 = arith.constant 0 : index
      %c0_20 = arith.constant 0 : index
      %33 = vector.load %arg2[%c0_19, %c0_20] : memref<16x128xf32, #tpu.memory_space<vmem>>, vector<16x128xf32>
      %cst_21 = arith.constant dense<0.000000e+00> : vector<16xf32>
      %34 = vector.multi_reduction <add>, %33, %cst_21 [1] : vector<16x128xf32> to vector<16xf32>
      %35 = vector.shape_cast %34 : vector<16xf32> to vector<16x1xf32>
      %cst_22 = arith.constant 3.125000e-02 : f32
      %36 = vector.broadcast %cst_22 : f32 to vector<16x1xf32>
      %37 = arith.mulf %35, %36 : vector<16x1xf32>
      %38 = vector.broadcast %37 : vector<16x1xf32> to vector<16x128xf32>
      %39 = arith.subf %33, %38 : vector<16x128xf32>
      %40 = tpu.iota {dimensions = array<i32: 1>} : vector<16x128xi32>
      %c32_i32 = arith.constant 32 : i32
      %41 = vector.broadcast %c32_i32 : i32 to vector<16x128xi32>
      %42 = arith.cmpi slt, %40, %41 : vector<16x128xi32>
      %cst_23 = arith.constant 0.000000e+00 : f32
      %43 = vector.broadcast %cst_23 : f32 to vector<16x128xf32>
      %44 = arith.select %42, %39, %43 : vector<16x128xi1>, vector<16x128xf32>
      %45 = arith.mulf %44, %44 : vector<16x128xf32>
      %cst_24 = arith.constant dense<0.000000e+00> : vector<16xf32>
      %46 = vector.multi_reduction <add>, %45, %cst_24 [1] : vector<16x128xf32> to vector<16xf32>
      %47 = vector.shape_cast %46 : vector<16xf32> to vector<16x1xf32>
      %cst_25 = arith.constant 3.125000e-02 : f32
      %48 = vector.broadcast %cst_25 : f32 to vector<16x1xf32>
      %49 = arith.mulf %47, %48 : vector<16x1xf32>
      %cst_26 = arith.constant 9.99999974E-6 : f32
      %50 = vector.broadcast %cst_26 : f32 to vector<16x1xf32>
      %51 = arith.addf %49, %50 : vector<16x1xf32>
      %52 = math.rsqrt %51 : vector<16x1xf32>
      %53 = vector.broadcast %52 : vector<16x1xf32> to vector<16x128xf32>
      %54 = arith.mulf %44, %53 : vector<16x128xf32>
      %c0_27 = arith.constant 0 : index
      %c0_28 = arith.constant 0 : index
      %55 = vector.load %arg3[%c0_27, %c0_28] : memref<1x128xf32, #tpu.memory_space<vmem>>, vector<1x128xf32>
      %56 = vector.broadcast %55 : vector<1x128xf32> to vector<16x128xf32>
      %57 = arith.mulf %54, %56 : vector<16x128xf32>
      %c0_29 = arith.constant 0 : index
      %c0_30 = arith.constant 0 : index
      %58 = vector.load %arg4[%c0_29, %c0_30] : memref<1x128xf32, #tpu.memory_space<vmem>>, vector<1x128xf32>
      %59 = vector.broadcast %58 : vector<1x128xf32> to vector<16x128xf32>
      %60 = arith.addf %57, %59 : vector<16x128xf32>
      %c0_31 = arith.constant 0 : index
      %c0_32 = arith.constant 0 : index
      %61 = vector.load %arg10[%c0_31, %c0_32] : memref<16x128xf32, #tpu.memory_space<vmem>>, vector<16x128xf32>
      tpu.vector_store %arg10[%c0_31, %c0_32], %60 {strides = array<i32>} : memref<16x128xf32, #tpu.memory_space<vmem>>, vector<16x128xf32>,
    } else {
    }
    %c0 = arith.constant 0 : index
    %c0_1 = arith.constant 0 : index
    %3 = vector.load %arg10[%c0, %c0_1] : memref<16x128xf32, #tpu.memory_space<vmem>>, vector<16x128xf32>
    %c0_2 = arith.constant 0 : index
    %c0_3 = arith.constant 0 : index
    %4 = vector.load %arg5[%c0_2, %c0_3] : memref<128x128xf32, #tpu.memory_space<vmem>>, vector<128x128xf32>
    %cst = arith.constant dense<0.000000e+00> : vector<16x128xf32>
    %5 = tpu.matmul %3, %4, %cst {dimension_numbers = #tpu.dot_dimension_numbers<[1], [0], [0], [1], [0, 0, 1, 1], [], []>} : vector<16x128xf32>, vector<128x128xf32>, vector<16x128xf32> -> vector<16x128xf32>
    %c0_4 = arith.constant 0 : index
    %c0_5 = arith.constant 0 : index
    %6 = vector.load %arg6[%c0_4, %c0_5] : memref<1x128xf32, #tpu.memory_space<vmem>>, vector<1x128xf32>
    %7 = vector.broadcast %6 : vector<1x128xf32> to vector<16x128xf32>
    %8 = arith.addf %5, %7 : vector<16x128xf32>
    %cst_6 = arith.constant 5.000000e-01 : f32
    %9 = vector.broadcast %cst_6 : f32 to vector<16x128xf32>
    %10 = arith.mulf %9, %8 : vector<16x128xf32>
    %cst_7 = arith.constant 4.471500e-02 : f32
    %11 = vector.broadcast %cst_7 : f32 to vector<16x128xf32>
    %12 = arith.mulf %11, %8 : vector<16x128xf32>
    %13 = arith.mulf %12, %8 : vector<16x128xf32>
    %14 = arith.mulf %13, %8 : vector<16x128xf32>
    %15 = arith.addf %8, %14 : vector<16x128xf32>
    %cst_8 = arith.constant 0.797884583 : f32
    %16 = vector.broadcast %cst_8 : f32 to vector<16x128xf32>
    %17 = arith.mulf %16, %15 : vector<16x128xf32>
    %18 = math.tanh %17 : vector<16x128xf32>
    %cst_9 = arith.constant 1.000000e+00 : f32
    %19 = vector.broadcast %cst_9 : f32 to vector<16x128xf32>
    %20 = arith.addf %19, %18 : vector<16x128xf32>
    %21 = arith.mulf %10, %20 : vector<16x128xf32>
    %c0_10 = arith.constant 0 : index
    %c0_11 = arith.constant 0 : index
    %22 = vector.load %arg7[%c0_10, %c0_11] : memref<128x128xf32, #tpu.memory_space<vmem>>, vector<128x128xf32>
    %cst_12 = arith.constant dense<0.000000e+00> : vector<16x128xf32>
    %23 = tpu.matmul %21, %22, %cst_12 {dimension_numbers = #tpu.dot_dimension_numbers<[1], [0], [0], [1], [0, 0, 1, 1], [], []>} : vector<16x128xf32>, vector<128x128xf32>, vector<16x128xf32> -> vector<16x128xf32>
    %c0_i32_13 = arith.constant 0 : i32
    %24 = arith.cmpi eq, %arg1, %c0_i32_13 : i32
    %25 = arith.extui %24 : i1 to i32
    %c0_i32_14 = arith.constant 0 : i32
    %26 = arith.cmpi ne, %25, %c0_i32_14 : i32
    scf.if %26 {
      %c0_19 = arith.constant 0 : index
      %c0_20 = arith.constant 0 : index
      %33 = vector.load %arg11[%c0_19, %c0_20] : memref<16x128xf32, #tpu.memory_space<vmem>>, vector<16x128xf32>
      tpu.vector_store %arg11[%c0_19, %c0_20], %23 {strides = array<i32>} : memref<16x128xf32, #tpu.memory_space<vmem>>, vector<16x128xf32>,
    } else {
    }
    %c0_i32_15 = arith.constant 0 : i32
    %27 = arith.cmpi ne, %arg1, %c0_i32_15 : i32
    %28 = arith.extui %27 : i1 to i32
    %c0_i32_16 = arith.constant 0 : i32
    %29 = arith.cmpi ne, %28, %c0_i32_16 : i32
    scf.if %29 {
      %c0_19 = arith.constant 0 : index
      %c0_20 = arith.constant 0 : index
      %33 = vector.load %arg11[%c0_19, %c0_20] : memref<16x128xf32, #tpu.memory_space<vmem>>, vector<16x128xf32>
      %34 = arith.addf %33, %23 : vector<16x128xf32>
      %c0_21 = arith.constant 0 : index
      %c0_22 = arith.constant 0 : index
      %35 = vector.load %arg11[%c0_21, %c0_22] : memref<16x128xf32, #tpu.memory_space<vmem>>, vector<16x128xf32>
      tpu.vector_store %arg11[%c0_21, %c0_22], %34 {strides = array<i32>} : memref<16x128xf32, #tpu.memory_space<vmem>>, vector<16x128xf32>,
    } else {
    }
    %c0_i32_17 = arith.constant 0 : i32
    %30 = arith.cmpi eq, %arg1, %c0_i32_17 : i32
    %31 = arith.extui %30 : i1 to i32
    %c0_i32_18 = arith.constant 0 : i32
    %32 = arith.cmpi ne, %31, %c0_i32_18 : i32
    scf.if %32 {
      %c0_19 = arith.constant 0 : index
      %c0_20 = arith.constant 0 : index
      %33 = vector.load %arg11[%c0_19, %c0_20] : memref<16x128xf32, #tpu.memory_space<vmem>>, vector<16x128xf32>
      %c0_21 = arith.constant 0 : index
      %c0_22 = arith.constant 0 : index
      %34 = vector.load %arg8[%c0_21, %c0_22] : memref<1x128xf32, #tpu.memory_space<vmem>>, vector<1x128xf32>
      %35 = vector.broadcast %34 : vector<1x128xf32> to vector<16x128xf32>
      %36 = arith.addf %33, %35 : vector<16x128xf32>
      %c0_23 = arith.constant 0 : index
      %c0_24 = arith.constant 0 : index
      %37 = vector.load %arg9[%c0_23, %c0_24] : memref<16x128xf32, #tpu.memory_space<vmem>>, vector<16x128xf32>
      tpu.vector_store %arg9[%c0_23, %c0_24], %36 {strides = array<i32>} : memref<16x128xf32, #tpu.memory_space<vmem>>, vector<16x128xf32>,
    } else {
    }
    return
  }
  func.func @transform_0(%arg0: i32, %arg1: i32) -> (i32, i32) {
    %c0_i32 = arith.constant 0 : i32
    %c0_i32_0 = arith.constant 0 : i32
    return %arg0, %c0_i32 : i32, i32
  }
  func.func @transform_1(%arg0: i32, %arg1: i32) -> (i32, i32) {
    %c0_i32 = arith.constant 0 : i32
    %c0_i32_0 = arith.constant 0 : i32
    %c0_i32_1 = arith.constant 0 : i32
    return %c0_i32, %c0_i32_0 : i32, i32
  }
  func.func @transform_2(%arg0: i32, %arg1: i32) -> (i32, i32) {
    %c0_i32 = arith.constant 0 : i32
    %c0_i32_0 = arith.constant 0 : i32
    %c0_i32_1 = arith.constant 0 : i32
    return %c0_i32, %c0_i32_0 : i32, i32
  }
  func.func @transform_3(%arg0: i32, %arg1: i32) -> (i32, i32) {
    %c2_i32 = arith.constant 2 : i32
    %c0_i32 = arith.constant 0 : i32
    %0 = arith.cmpi eq, %c2_i32, %c0_i32 : i32
    %c1_i32 = arith.constant 1 : i32
    %1 = arith.select %0, %c1_i32, %c2_i32 : i32
    %2 = arith.remsi %arg0, %1 : i32
    %c0_i32_0 = arith.constant 0 : i32
    %3 = arith.cmpi ne, %2, %c0_i32_0 : i32
    %c0_i32_1 = arith.constant 0 : i32
    %4 = arith.cmpi slt, %2, %c0_i32_1 : i32
    %c0_i32_2 = arith.constant 0 : i32
    %5 = arith.cmpi slt, %1, %c0_i32_2 : i32
    %6 = arith.xori %4, %5 : i1
    %7 = arith.andi %6, %3 : i1
    %8 = arith.addi %2, %1 : i32
    %9 = arith.select %7, %8, %2 : i32
    %c2_i32_3 = arith.constant 2 : i32
    %10 = arith.muli %c2_i32_3, %arg1 : i32
    %c0_i32_4 = arith.constant 0 : i32
    %11 = arith.subi %c0_i32_4, %10 : i32
    %12 = arith.muli %9, %11 : i32
    %13 = arith.addi %arg1, %12 : i32
    %c0_i32_5 = arith.constant 0 : i32
    %c0_i32_6 = arith.constant 0 : i32
    return %c0_i32_5, %13 : i32, i32
  }
  func.func @transform_4(%arg0: i32, %arg1: i32) -> (i32, i32) {
    %c2_i32 = arith.constant 2 : i32
    %c0_i32 = arith.constant 0 : i32
    %0 = arith.cmpi eq, %c2_i32, %c0_i32 : i32
    %c1_i32 = arith.constant 1 : i32
    %1 = arith.select %0, %c1_i32, %c2_i32 : i32
    %2 = arith.remsi %arg0, %1 : i32
    %c0_i32_0 = arith.constant 0 : i32
    %3 = arith.cmpi ne, %2, %c0_i32_0 : i32
    %c0_i32_1 = arith.constant 0 : i32
    %4 = arith.cmpi slt, %2, %c0_i32_1 : i32
    %c0_i32_2 = arith.constant 0 : i32
    %5 = arith.cmpi slt, %1, %c0_i32_2 : i32
    %6 = arith.xori %4, %5 : i1
    %7 = arith.andi %6, %3 : i1
    %8 = arith.addi %2, %1 : i32
    %9 = arith.select %7, %8, %2 : i32
    %c2_i32_3 = arith.constant 2 : i32
    %10 = arith.muli %c2_i32_3, %arg1 : i32
    %c0_i32_4 = arith.constant 0 : i32
    %11 = arith.subi %c0_i32_4, %10 : i32
    %12 = arith.muli %9, %11 : i32
    %13 = arith.addi %arg1, %12 : i32
    %c0_i32_5 = arith.constant 0 : i32
    %c0_i32_6 = arith.constant 0 : i32
    return %c0_i32_5, %13 : i32, i32
  }
  func.func @transform_5(%arg0: i32, %arg1: i32) -> (i32, i32) {
    %c2_i32 = arith.constant 2 : i32
    %c0_i32 = arith.constant 0 : i32
    %0 = arith.cmpi eq, %c2_i32, %c0_i32 : i32
    %c1_i32 = arith.constant 1 : i32
    %1 = arith.select %0, %c1_i32, %c2_i32 : i32
    %2 = arith.remsi %arg0, %1 : i32
    %c0_i32_0 = arith.constant 0 : i32
    %3 = arith.cmpi ne, %2, %c0_i32_0 : i32
    %c0_i32_1 = arith.constant 0 : i32
    %4 = arith.cmpi slt, %2, %c0_i32_1 : i32
    %c0_i32_2 = arith.constant 0 : i32
    %5 = arith.cmpi slt, %1, %c0_i32_2 : i32
    %6 = arith.xori %4, %5 : i1
    %7 = arith.andi %6, %3 : i1
    %8 = arith.addi %2, %1 : i32
    %9 = arith.select %7, %8, %2 : i32
    %c2_i32_3 = arith.constant 2 : i32
    %10 = arith.muli %c2_i32_3, %arg1 : i32
    %c0_i32_4 = arith.constant 0 : i32
    %11 = arith.subi %c0_i32_4, %10 : i32
    %12 = arith.muli %9, %11 : i32
    %13 = arith.addi %arg1, %12 : i32
    %c0_i32_5 = arith.constant 0 : i32
    %c0_i32_6 = arith.constant 0 : i32
    return %13, %c0_i32_5 : i32, i32
  }
  func.func @transform_6(%arg0: i32, %arg1: i32) -> (i32, i32) {
    %c0_i32 = arith.constant 0 : i32
    %c0_i32_0 = arith.constant 0 : i32
    %c0_i32_1 = arith.constant 0 : i32
    return %c0_i32, %c0_i32_0 : i32, i32
  }
  func.func @transform_7(%arg0: i32, %arg1: i32) -> (i32, i32) {
    %c0_i32 = arith.constant 0 : i32
    %c0_i32_0 = arith.constant 0 : i32
    return %arg0, %c0_i32 : i32, i32
  }
}

</mosaic_0001>

<llo_original>
// kernel: tpu_custom_call.1
$region0: #{tpu_custom_call.1}
  #allocation0 [shape = 'u32[]', space=smem, size = 0x4, offset = 0x4, fixed_abs, tag = 'smem constant byte address 0x4 - core index']
  #allocation1 [shape = 'u32[144,128]{1,0:T(1,128)}', space=vmem, size = 0x12000, scoped, tag = 'internal scratch']
  #allocation2 [shape = 'f32[16,128]{1,0:T(8,128)}', space=vmem, size = 0x2000, scoped, tag = 'scratch operand']
  #allocation3 [shape = 'f32[16,128]{1,0:T(8,128)}', space=vmem, size = 0x2000, scoped, tag = 'scratch operand']
  %s0 = inlined_call_operand.hbm [shape: f32[16,128], index: 0, kind: input, shape index: {}]
  %s1 = inlined_call_operand.hbm [shape: f32[1,128], index: 1, kind: input, shape index: {}]
  %s2 = inlined_call_operand.hbm [shape: f32[1,128], index: 2, kind: input, shape index: {}]
  %s3 = inlined_call_operand.hbm [shape: f32[128,128], index: 3, kind: input, shape index: {}]
  %s4 = inlined_call_operand.hbm [shape: f32[1,128], index: 4, kind: input, shape index: {}]
  %s5 = inlined_call_operand.hbm [shape: f32[128,128], index: 5, kind: input, shape index: {}]
  %s6 = inlined_call_operand.hbm [shape: f32[1,128], index: 6, kind: input, shape index: {}]
  %s7 = inlined_call_operand.hbm [shape: f32[16,128], index: 7, kind: output, shape index: {}]
  %s8 = sld [smem:[#allocation0]]
  $region82: #{tpu_custom_call.1} parent=0
    _
  %s10 = ssub.s32 1, %s8
  %s11 = scalar_select 0, %s10, %s8
  $region1: #{tpu_custom_call.1} parent=0
    #allocation4 [shape = 'u8[8192]{0}', space=vmem, size = 0x2000, scoped, tag = 'input window, operand 0, single buffered']
    #allocation5 [shape = 's32[1]{0}', space=sflag, size = 0x4, scoped, tag = 'scoped memory for tpu_custom_call.1']
    #allocation6 [shape = 's32[1]{0}', space=sflag, size = 0x4, scoped, tag = 'scoped memory for tpu_custom_call.1']
    #allocation7 [shape = 'u8[512]{0}', space=vmem, size = 0x400, scoped, tag = 'input window, operand 1, single buffered']
    #allocation8 [shape = 's32[1]{0}', space=sflag, size = 0x4, scoped, tag = 'scoped memory for tpu_custom_call.1']
    #allocation9 [shape = 'u8[512]{0}', space=vmem, size = 0x400, scoped, tag = 'input window, operand 2, single buffered']
    #allocation10 [shape = 'u8[65536]{0}', space=vmem, size = 0x10000, scoped, tag = 'input window, operand 3, single buffered']
    #allocation11 [shape = 's32[1]{0}', space=sflag, size = 0x4, scoped, tag = 'scoped memory for tpu_custom_call.1']
    #allocation12 [shape = 'u8[512]{0}', space=vmem, size = 0x400, scoped, tag = 'input window, operand 4, single buffered']
    #allocation13 [shape = 'u8[65536]{0}', space=vmem, size = 0x10000, scoped, tag = 'input window, operand 5, single buffered']
    #allocation14 [shape = 's32[1]{0}', space=sflag, size = 0x4, scoped, tag = 'scoped memory for tpu_custom_call.1']
    #allocation15 [shape = 'u8[512]{0}', space=vmem, size = 0x400, scoped, tag = 'input window, operand 6, single buffered']
    #allocation16 [shape = 'u8[8192]{0}', space=vmem, size = 0x2000, scoped, tag = 'output window, operand 0, single buffered']
    %12 = vsyncpa [#allocation5], 0
    %13 = vsyncpa [#allocation8], 0
    %14 = vsyncpa [#allocation11], 0
    %15 = vsyncpa [#allocation14], 0
    %16 = vsyncpa [#allocation6], 0
    // Predicated region
    $region2: #{tpu_custom_call.1} parent=1 // pred_check
      _
    $region3: #{tpu_custom_call.1} parent=1 // pred_check_branch
      %18 = sbr.rel (0) target = $region5
    $region4: #{tpu_custom_call.1} parent=1 // pred_region
      %s20 = ssub.s32 256, 256
      %21 = vsyncadd [#allocation5], %s20
      %s22 = sshll.u32 [#allocation4], 4
      %s23 = int_to_ptr.vmem [resolvable:$true] %s22
      %28 = dma.hbm_to_vmem [thread:$0]  %s0, 256, %s23, [#allocation5], 128, 128, 8
    $region5: #{tpu_custom_call.1} parent=1 // pred_fallthru
      _
    // Predicated region
    $region6: #{tpu_custom_call.1} parent=1 // pred_check
      _
    $region7: #{tpu_custom_call.1} parent=1 // pred_check_branch
      %30 = sbr.rel (0) target = $region9
    $region8: #{tpu_custom_call.1} parent=1 // pred_region
      %s32 = ssub.s32 16, 16
      %33 = vsyncadd [#allocation8], %s32
      %s35 = sshll.u32 [#allocation7], 4
      %s36 = int_to_ptr.vmem [resolvable:$true] %s35
      %38 = dma.hbm_to_vmem [thread:$0]  %s1, 16, %s36, [#allocation8]
    $region9: #{tpu_custom_call.1} parent=1 // pred_fallthru
      _
    // Predicated region
    $region10: #{tpu_custom_call.1} parent=1 // pred_check
      _
    $region11: #{tpu_custom_call.1} parent=1 // pred_check_branch
      %40 = sbr.rel (0) target = $region13
    $region12: #{tpu_custom_call.1} parent=1 // pred_region
      %s42 = ssub.s32 16, 16
      %43 = vsyncadd [#allocation8], %s42
      %s45 = sshll.u32 [#allocation9], 4
      %s46 = int_to_ptr.vmem [resolvable:$true] %s45
      %48 = dma.hbm_to_vmem [thread:$0]  %s2, 16, %s46, [#allocation8]
    $region13: #{tpu_custom_call.1} parent=1 // pred_fallthru
      _
    // Predicated region
    $region14: #{tpu_custom_call.1} parent=1 // pred_check
      _
    $region15: #{tpu_custom_call.1} parent=1 // pred_check_branch
      %50 = sbr.rel (0) target = $region17
    $region16: #{tpu_custom_call.1} parent=1 // pred_region
      %s51 = ssub.s32 0, 0
      %s52 = ssub.s32 0, 0
      %p53 = scmp.ne.s32.totalorder 0, 0
      %p54 = scmp.lt.s32.totalorder 0, 0
      %p55 = pnand %p54, %p53
      %p56 = pneg %p55
      %s57 = sadd.s32 0, 2
      %s58 = scalar_select %p56, %s57, 0
      %s59 = smul.u32 0, 2
      %s60 = ssub.s32 0, %s59
      %s61 = smul.u32 %s58, %s60
      %s62 = sadd.s32 0, %s61
      %s64 = ssub.s32 2048, 2048
      %65 = vsyncadd [#allocation11], %s64
      %s66 = smul.addr %s62, 128
      %s67 = scalar_lea.hbm %s3, %s66
      %s68 = sshll.u32 [#allocation10], 4
      %s69 = int_to_ptr.vmem [resolvable:$true] %s68
      %74 = dma.hbm_to_vmem [thread:$0]  %s67, 2048, %s69, [#allocation11], 128, 128, 8
    $region17: #{tpu_custom_call.1} parent=1 // pred_fallthru
      _
    // Predicated region
    $region18: #{tpu_custom_call.1} parent=1 // pred_check
      _
    $region19: #{tpu_custom_call.1} parent=1 // pred_check_branch
      %76 = sbr.rel (0) target = $region21
    $region20: #{tpu_custom_call.1} parent=1 // pred_region
      %s77 = ssub.s32 0, 0
      %s78 = ssub.s32 0, 0
      %p79 = scmp.ne.s32.totalorder 0, 0
      %p80 = scmp.lt.s32.totalorder 0, 0
      %p81 = pnand %p80, %p79
      %p82 = pneg %p81
      %s83 = sadd.s32 0, 2
      %s84 = scalar_select %p82, %s83, 0
      %s85 = smul.u32 0, 2
      %s86 = ssub.s32 0, %s85
      %s87 = smul.u32 %s84, %s86
      %s88 = sadd.s32 0, %s87
      %s90 = ssub.s32 16, 16
      %91 = vsyncadd [#allocation11], %s90
      %s92 = smul.addr %s88, 16
      %s93 = scalar_lea.hbm %s4, %s92
      %s95 = sshll.u32 [#allocation12], 4
      %s96 = int_to_ptr.vmem [resolvable:$true] %s95
      %98 = dma.hbm_to_vmem [thread:$0]  %s93, 16, %s96, [#allocation11]
    $region21: #{tpu_custom_call.1} parent=1 // pred_fallthru
      _
    // Predicated region
    $region22: #{tpu_custom_call.1} parent=1 // pred_check
      _
    $region23: #{tpu_custom_call.1} parent=1 // pred_check_branch
      %100 = sbr.rel (0) target = $region25
    $region24: #{tpu_custom_call.1} parent=1 // pred_region
      %s101 = ssub.s32 0, 0
      %s102 = ssub.s32 0, 0
      %p103 = scmp.ne.s32.totalorder 0, 0
      %p104 = scmp.lt.s32.totalorder 0, 0
      %p105 = pnand %p104, %p103
      %p106 = pneg %p105
      %s107 = sadd.s32 0, 2
      %s108 = scalar_select %p106, %s107, 0
      %s109 = smul.u32 0, 2
      %s110 = ssub.s32 0, %s109
      %s111 = smul.u32 %s108, %s110
      %s112 = sadd.s32 0, %s111
      %s113 = smul.u32 16, %s112
      %s115 = ssub.s32 2048, 2048
      %116 = vsyncadd [#allocation14], %s115
      %s117 = smul.addr %s113, 128
      %s118 = scalar_lea.hbm %s5, %s117
      %s119 = sshll.u32 [#allocation13], 4
      %s120 = int_to_ptr.vmem [resolvable:$true] %s119
      %125 = dma.hbm_to_vmem [thread:$0]  %s118, 2048, %s120, [#allocation14], 128, 128, 8
    $region25: #{tpu_custom_call.1} parent=1 // pred_fallthru
      _
    // Predicated region
    $region26: #{tpu_custom_call.1} parent=1 // pred_check
      _
    $region27: #{tpu_custom_call.1} parent=1 // pred_check_branch
      %127 = sbr.rel (0) target = $region29
    $region28: #{tpu_custom_call.1} parent=1 // pred_region
      %s129 = ssub.s32 16, 16
      %130 = vsyncadd [#allocation14], %s129
      %s132 = sshll.u32 [#allocation15], 4
      %s133 = int_to_ptr.vmem [resolvable:$true] %s132
      %135 = dma.hbm_to_vmem [thread:$0]  %s6, 16, %s133, [#allocation14]
    $region29: #{tpu_custom_call.1} parent=1 // pred_fallthru
      _
    // Predicated region
    $region30: #{tpu_custom_call.1} parent=1 // pred_check
      _
    $region31: #{tpu_custom_call.1} parent=1 // pred_check_branch
      %137 = sbr.rel (0) target = $region33
    $region32: #{tpu_custom_call.1} parent=1 // pred_region
      %138 = dma.done [#allocation5], 256
    $region33: #{tpu_custom_call.1} parent=1 // pred_fallthru
      _
    // Predicated region
    $region34: #{tpu_custom_call.1} parent=1 // pred_check
      _
    $region35: #{tpu_custom_call.1} parent=1 // pred_check_branch
      %140 = sbr.rel (0) target = $region37
    $region36: #{tpu_custom_call.1} parent=1 // pred_region
      %141 = dma.done [#allocation8], 16
    $region37: #{tpu_custom_call.1} parent=1 // pred_fallthru
      _
    // Predicated region
    $region38: #{tpu_custom_call.1} parent=1 // pred_check
      _
    $region39: #{tpu_custom_call.1} parent=1 // pred_check_branch
      %143 = sbr.rel (0) target = $region41
    $region40: #{tpu_custom_call.1} parent=1 // pred_region
      %144 = dma.done [#allocation8], 16
    $region41: #{tpu_custom_call.1} parent=1 // pred_fallthru
      _
    // Predicated region
    $region42: #{tpu_custom_call.1} parent=1 // pred_check
      _
    $region43: #{tpu_custom_call.1} parent=1 // pred_check_branch
      %146 = sbr.rel (0) target = $region45
    $region44: #{tpu_custom_call.1} parent=1 // pred_region
      %147 = dma.done [#allocation11], 2048
    $region45: #{tpu_custom_call.1} parent=1 // pred_fallthru
      _
    // Predicated region
    $region46: #{tpu_custom_call.1} parent=1 // pred_check
      _
    $region47: #{tpu_custom_call.1} parent=1 // pred_check_branch
      %149 = sbr.rel (0) target = $region49
    $region48: #{tpu_custom_call.1} parent=1 // pred_region
      %150 = dma.done [#allocation11], 16
    $region49: #{tpu_custom_call.1} parent=1 // pred_fallthru
      _
    // Predicated region
    $region50: #{tpu_custom_call.1} parent=1 // pred_check
      _
    $region51: #{tpu_custom_call.1} parent=1 // pred_check_branch
      %152 = sbr.rel (0) target = $region53
    $region52: #{tpu_custom_call.1} parent=1 // pred_region
      %153 = dma.done [#allocation14], 2048
    $region53: #{tpu_custom_call.1} parent=1 // pred_fallthru
      _
    // Predicated region
    $region54: #{tpu_custom_call.1} parent=1 // pred_check
      _
    $region55: #{tpu_custom_call.1} parent=1 // pred_check_branch
      %155 = sbr.rel (0) target = $region57
    $region56: #{tpu_custom_call.1} parent=1 // pred_region
      %156 = dma.done [#allocation14], 16
    $region57: #{tpu_custom_call.1} parent=1 // pred_fallthru
      _
    %s157 = ssub.s32 0, 0
    %s158 = ssub.s32 0, 0
    %p159 = scmp.ne.s32.totalorder 0, 0
    %p160 = scmp.lt.s32.totalorder 0, 0
    %p161 = pnand %p160, %p159
    %p162 = pneg %p161
    %s163 = sadd.s32 0, 2
    %s164 = scalar_select %p162, %s163, 0
    %s165 = smul.u32 0, 2
    %s166 = ssub.s32 0, %s165
    %s167 = smul.u32 %s164, %s166
    %s168 = sadd.s32 0, %s167
    %s169 = ssub.s32 0, 0
    %s170 = ssub.s32 0, 0
    %p171 = scmp.ne.s32.totalorder 0, 0
    %p172 = scmp.lt.s32.totalorder 0, 0
    %p173 = pnand %p172, %p171
    %p174 = pneg %p173
    %s175 = sadd.s32 0, 2
    %s176 = scalar_select %p174, %s175, 0
    %s177 = smul.u32 0, 2
    %s178 = ssub.s32 0, %s177
    %s179 = smul.u32 %s176, %s178
    %s180 = sadd.s32 0, %s179
    %s181 = ssub.s32 0, 0
    %s182 = ssub.s32 0, 0
    %p183 = scmp.ne.s32.totalorder 0, 0
    %p184 = scmp.lt.s32.totalorder 0, 0
    %p185 = pnand %p184, %p183
    %p186 = pneg %p185
    %s187 = sadd.s32 0, 2
    %s188 = scalar_select %p186, %s187, 0
    %s189 = smul.u32 0, 2
    %s190 = ssub.s32 0, %s189
    %s191 = smul.u32 %s188, %s190
    %s192 = sadd.s32 0, %s191
    %s193 = smul.u32 16, %s192
    %p194 = scmp.eq.s32.totalorder 0, 0
    // Predicated region
    $region58: #{tpu_custom_call.1} parent=1 // pred_check
      %p195 = pneg %p194
    $region59: #{tpu_custom_call.1} parent=1 // pred_check_branch
      %197 = sbr.rel (%p195) target = $region61
    $region60: #{tpu_custom_call.1} parent=1 // pred_region
      %v198 = vld [vmem:[#allocation4] sm:$0xff]
      %v199 = vld [vmem:[#allocation4 + $0x8] sm:$0xff]
      %200 = vadd.xlane.f32.xlu0 %v198
      %v201 = vpop.xlane.xlu0 %200
      %202 = vadd.xlane.f32.xlu0 %v199
      %v203 = vpop.xlane.xlu0 %202
      %v204 = vmul.f32 %v201, 0.03125
      %v205 = vmul.f32 %v203, 0.03125
      %v206 = vsub.f32 %v198, %v204
      %v207 = vsub.f32 %v199, %v205
      %v208 = vlaneseq
      %v209 = vand.u32 %v208, 127
      %vm210 = vcmp.lt.s32.totalorder %v209, 32
      %v211 = vsel %vm210, %v206, 0.0
      %v212 = vsel %vm210, %v207, 0.0
      %v213 = vmul.f32 %v211, %v211
      %v214 = vmul.f32 %v212, %v212
      %215 = vadd.xlane.f32.xlu0 %v213
      %v216 = vpop.xlane.xlu0 %215
      %217 = vadd.xlane.f32.xlu0 %v214
      %v218 = vpop.xlane.xlu0 %217
      %v219 = vmul.f32 %v216, 0.03125
      %v220 = vmul.f32 %v218, 0.03125
      %v221 = vadd.f32 %v219, 1e-05
      %v222 = vadd.f32 %v220, 1e-05
      %v223 = vrsqrt.pop %v221
      %v224 = vrsqrt.pop %v222
      %v225 = vmul.f32 %v211, %v223
      %v226 = vmul.f32 %v212, %v224
      %v227 = vld [vmem:[#allocation7] sm:$0x1]
      %v229 = vlaneseq
      %v230 = vshrl.u32 %v229, 7
      %v231 = vsub.s32 0, %v230
      %v232 = vrot.slane %v227, %v231
      %v234 = vmul.f32 %v225, %v232
      %v235 = vmul.f32 %v226, %v232
      %v236 = vld [vmem:[#allocation9] sm:$0x1]
      %v238 = vlaneseq
      %v239 = vshrl.u32 %v238, 7
      %v240 = vsub.s32 0, %v239
      %v241 = vrot.slane %v236, %v240
      %v243 = vadd.f32 %v234, %v241
      %v244 = vadd.f32 %v235, %v241
      %245 = vst [vmem:[#allocation2] sm:$0xff] %v243
      %246 = vst [vmem:[#allocation2 + $0x8] sm:$0xff] %v244
    $region61: #{tpu_custom_call.1} parent=1 // pred_fallthru
      _
    %v247 = vld [vmem:[#allocation2] sm:$0xff]
    %v248 = vld [vmem:[#allocation2 + $0x8] sm:$0xff]
    %v249 = vld [vmem:[#allocation10] sm:$0xff]
    %v250 = vld [vmem:[#allocation10 + $0x8] sm:$0xff]
    %v251 = vld [vmem:[#allocation10 + $0x10] sm:$0xff]
    %v252 = vld [vmem:[#allocation10 + $0x18] sm:$0xff]
    %v253 = vld [vmem:[#allocation10 + $0x20] sm:$0xff]
    %v254 = vld [vmem:[#allocation10 + $0x28] sm:$0xff]
    %v255 = vld [vmem:[#allocation10 + $0x30] sm:$0xff]
    %v256 = vld [vmem:[#allocation10 + $0x38] sm:$0xff]
    %v257 = vld [vmem:[#allocation10 + $0x40] sm:$0xff]
    %v258 = vld [vmem:[#allocation10 + $0x48] sm:$0xff]
    %v259 = vld [vmem:[#allocation10 + $0x50] sm:$0xff]
    %v260 = vld [vmem:[#allocation10 + $0x58] sm:$0xff]
    %v261 = vld [vmem:[#allocation10 + $0x60] sm:$0xff]
    %v262 = vld [vmem:[#allocation10 + $0x68] sm:$0xff]
    %v263 = vld [vmem:[#allocation10 + $0x70] sm:$0xff]
    %v264 = vld [vmem:[#allocation10 + $0x78] sm:$0xff]
    %v265 = vld [vmem:[#allocation12] sm:$0x1]
    %v267 = vlaneseq
    %v268 = vshrl.u32 %v267, 7
    %v269 = vsub.s32 0, %v268
    %v270 = vrot.slane %v265, %v269
    %272 = vmatprep.subr.mxu0 0.0
    %273 = vmatpush1.msra.mxu0 %v249
    %274 = vmatprep.subr.mxu0 0.0
    %275 = vmatpush1.msra.mxu0 %v250
    %276 = vmatprep.subr.mxu0 0.0
    %277 = vmatpush1.msra.mxu0 %v251
    %278 = vmatprep.subr.mxu0 0.0
    %279 = vmatpush1.msra.mxu0 %v252
    %280 = vmatprep.subr.mxu0 0.0
    %281 = vmatpush1.msra.mxu0 %v253
    %282 = vmatprep.subr.mxu0 0.0
    %283 = vmatpush1.msra.mxu0 %v254
    %284 = vmatprep.subr.mxu0 0.0
    %285 = vmatpush1.msra.mxu0 %v255
    %286 = vmatprep.subr.mxu0 0.0
    %287 = vmatpush1.msra.mxu0 %v256
    %288 = vmatprep.subr.mxu0 0.0
    %289 = vmatpush1.msra.mxu0 %v257
    %290 = vmatprep.subr.mxu0 0.0
    %291 = vmatpush1.msra.mxu0 %v258
    %292 = vmatprep.subr.mxu0 0.0
    %293 = vmatpush1.msra.mxu0 %v259
    %294 = vmatprep.subr.mxu0 0.0
    %295 = vmatpush1.msra.mxu0 %v260
    %296 = vmatprep.subr.mxu0 0.0
    %297 = vmatpush1.msra.mxu0 %v261
    %298 = vmatprep.subr.mxu0 0.0
    %299 = vmatpush1.msra.mxu0 %v262
    %300 = vmatprep.subr.mxu0 0.0
    %301 = vmatpush1.msra.mxu0 %v263
    %302 = vmatprep.subr.mxu0 0.0
    %303 = vmatpush1.msra.mxu0 %v264
    %304 = vmatprep.subr.mxu0 0.0
    %305 = vmatpush1.msra.mxu0 0.0
    %306 = vmatprep.subr.mxu0 0.0
    %307 = vmatpush1.msra.mxu0 0.0
    %308 = vmatprep.subr.mxu0 0.0
    %309 = vmatpush1.msra.mxu0 0.0
    %310 = vmatprep.subr.mxu0 0.0
    %311 = vmatpush1.msra.mxu0 0.0
    %312 = vmatprep.subr.mxu0 0.0
    %313 = vmatpush1.msra.mxu0 0.0
    %314 = vmatprep.subr.mxu0 0.0
    %315 = vmatpush1.msra.mxu0 0.0
    %316 = vmatprep.subr.mxu0 0.0
    %317 = vmatpush1.msra.mxu0 0.0
    %318 = vmatprep.subr.mxu0 0.0
    %319 = vmatpush1.msra.mxu0 0.0
    %320 = vmatprep.subr.mxu0 0.0
    %321 = vmatpush1.msra.mxu0 0.0
    %322 = vmatprep.subr.mxu0 0.0
    %323 = vmatpush1.msra.mxu0 0.0
    %324 = vmatprep.subr.mxu0 0.0
    %325 = vmatpush1.msra.mxu0 0.0
    %326 = vmatprep.subr.mxu0 0.0
    %327 = vmatpush1.msra.mxu0 0.0
    %328 = vmatprep.subr.mxu0 0.0
    %329 = vmatpush1.msra.mxu0 0.0
    %330 = vmatprep.subr.mxu0 0.0
    %331 = vmatpush1.msra.mxu0 0.0
    %332 = vmatprep.subr.mxu0 0.0
    %333 = vmatpush1.msra.mxu0 0.0
    %334 = vmatprep.subr.mxu0 0.0
    %335 = vmatpush1.msra.mxu0 0.0
    %336 = vmatprep.mubr.f32.mxu0 0.0
    %337 = vmatmul.mubr.f32.gmra.mrb[0].mxu0 %v247
    %v338 = vpop.f32.mrb[0].mxu0
    %v339 = vadd.f32 %v270, %v338
    %v340 = vpop.f32.mrb[0].mxu0
    %341 = vmatprep.mubr.f32.mxu0 0.0
    %342 = vmatmul.mubr.f32.gmra.mrb[0].mxu0 %v248
    %v343 = vpop.f32.mrb[0].mxu0
    %v344 = vadd.f32 %v270, %v343
    %v345 = vpop.f32.mrb[0].mxu0
    %346 = vdwg.mxu0
    %v347 = vmul.f32 %v339, 0.5
    %v348 = vmul.f32 %v344, 0.5
    %v349 = vmul.f32 %v339, 0.044715
    %v350 = vmul.f32 %v344, 0.044715
    %v351 = vmul.f32 %v349, %v339
    %v352 = vmul.f32 %v350, %v344
    %v353 = vmul.f32 %v351, %v339
    %v354 = vmul.f32 %v352, %v344
    %v355 = vadd.f32 %v339, %v353
    %v356 = vadd.f32 %v344, %v354
    %v357 = vmul.f32 %v355, 0.7978846
    %v358 = vmul.f32 %v356, 0.7978846
    %v359 = vtanh.pop %v357
    %v360 = vtanh.pop %v358
    %v361 = vadd.f32 %v359, 1.0
    %v362 = vadd.f32 %v360, 1.0
    %v363 = vmul.f32 %v347, %v361
    %v364 = vmul.f32 %v348, %v362
    %v365 = vld [vmem:[#allocation13] sm:$0xff]
    %v366 = vld [vmem:[#allocation13 + $0x8] sm:$0xff]
    %v367 = vld [vmem:[#allocation13 + $0x10] sm:$0xff]
    %v368 = vld [vmem:[#allocation13 + $0x18] sm:$0xff]
    %v369 = vld [vmem:[#allocation13 + $0x20] sm:$0xff]
    %v370 = vld [vmem:[#allocation13 + $0x28] sm:$0xff]
    %v371 = vld [vmem:[#allocation13 + $0x30] sm:$0xff]
    %v372 = vld [vmem:[#allocation13 + $0x38] sm:$0xff]
    %v373 = vld [vmem:[#allocation13 + $0x40] sm:$0xff]
    %v374 = vld [vmem:[#allocation13 + $0x48] sm:$0xff]
    %v375 = vld [vmem:[#allocation13 + $0x50] sm:$0xff]
    %v376 = vld [vmem:[#allocation13 + $0x58] sm:$0xff]
    %v377 = vld [vmem:[#allocation13 + $0x60] sm:$0xff]
    %v378 = vld [vmem:[#allocation13 + $0x68] sm:$0xff]
    %v379 = vld [vmem:[#allocation13 + $0x70] sm:$0xff]
    %v380 = vld [vmem:[#allocation13 + $0x78] sm:$0xff]
    %381 = vmatprep.subr.mxu0 0.0
    %382 = vmatpush1.msra.mxu0 %v365
    %383 = vmatprep.subr.mxu0 0.0
    %384 = vmatpush1.msra.mxu0 %v366
    %385 = vmatprep.subr.mxu0 0.0
    %386 = vmatpush1.msra.mxu0 %v367
    %387 = vmatprep.subr.mxu0 0.0
    %388 = vmatpush1.msra.mxu0 %v368
    %389 = vmatprep.subr.mxu0 0.0
    %390 = vmatpush1.msra.mxu0 %v369
    %391 = vmatprep.subr.mxu0 0.0
    %392 = vmatpush1.msra.mxu0 %v370
    %393 = vmatprep.subr.mxu0 0.0
    %394 = vmatpush1.msra.mxu0 %v371
    %395 = vmatprep.subr.mxu0 0.0
    %396 = vmatpush1.msra.mxu0 %v372
    %397 = vmatprep.subr.mxu0 0.0
    %398 = vmatpush1.msra.mxu0 %v373
    %399 = vmatprep.subr.mxu0 0.0
    %400 = vmatpush1.msra.mxu0 %v374
    %401 = vmatprep.subr.mxu0 0.0
    %402 = vmatpush1.msra.mxu0 %v375
    %403 = vmatprep.subr.mxu0 0.0
    %404 = vmatpush1.msra.mxu0 %v376
    %405 = vmatprep.subr.mxu0 0.0
    %406 = vmatpush1.msra.mxu0 %v377
    %407 = vmatprep.subr.mxu0 0.0
    %408 = vmatpush1.msra.mxu0 %v378
    %409 = vmatprep.subr.mxu0 0.0
    %410 = vmatpush1.msra.mxu0 %v379
    %411 = vmatprep.subr.mxu0 0.0
    %412 = vmatpush1.msra.mxu0 %v380
    %413 = vmatprep.subr.mxu0 0.0
    %414 = vmatpush1.msra.mxu0 0.0
    %415 = vmatprep.subr.mxu0 0.0
    %416 = vmatpush1.msra.mxu0 0.0
    %417 = vmatprep.subr.mxu0 0.0
    %418 = vmatpush1.msra.mxu0 0.0
    %419 = vmatprep.subr.mxu0 0.0
    %420 = vmatpush1.msra.mxu0 0.0
    %421 = vmatprep.subr.mxu0 0.0
    %422 = vmatpush1.msra.mxu0 0.0
    %423 = vmatprep.subr.mxu0 0.0
    %424 = vmatpush1.msra.mxu0 0.0
    %425 = vmatprep.subr.mxu0 0.0
    %426 = vmatpush1.msra.mxu0 0.0
    %427 = vmatprep.subr.mxu0 0.0
    %428 = vmatpush1.msra.mxu0 0.0
    %429 = vmatprep.subr.mxu0 0.0
    %430 = vmatpush1.msra.mxu0 0.0
    %431 = vmatprep.subr.mxu0 0.0
    %432 = vmatpush1.msra.mxu0 0.0
    %433 = vmatprep.subr.mxu0 0.0
    %434 = vmatpush1.msra.mxu0 0.0
    %435 = vmatprep.subr.mxu0 0.0
    %436 = vmatpush1.msra.mxu0 0.0
    %437 = vmatprep.subr.mxu0 0.0
    %438 = vmatpush1.msra.mxu0 0.0
    %439 = vmatprep.subr.mxu0 0.0
    %440 = vmatpush1.msra.mxu0 0.0
    %441 = vmatprep.subr.mxu0 0.0
    %442 = vmatpush1.msra.mxu0 0.0
    %443 = vmatprep.subr.mxu0 0.0
    %444 = vmatpush1.msra.mxu0 0.0
    %445 = vmatprep.mubr.f32.mxu0 0.0
    %446 = vmatmul.mubr.f32.gmra.mrb[0].mxu0 %v363
    %v447 = vpop.f32.mrb[0].mxu0
    %v448 = vadd.f32 0.0, %v447
    %v449 = vpop.f32.mrb[0].mxu0
    %450 = vmatprep.mubr.f32.mxu0 0.0
    %451 = vmatmul.mubr.f32.gmra.mrb[0].mxu0 %v364
    %v452 = vpop.f32.mrb[0].mxu0
    %v453 = vadd.f32 0.0, %v452
    %v454 = vpop.f32.mrb[0].mxu0
    %455 = vdwg.mxu0
    // Predicated region
    $region62: #{tpu_custom_call.1} parent=1 // pred_check
      %p456 = pneg %p194
    $region63: #{tpu_custom_call.1} parent=1 // pred_check_branch
      %458 = sbr.rel (%p456) target = $region65
    $region64: #{tpu_custom_call.1} parent=1 // pred_region
      %459 = vst [vmem:[#allocation3] sm:$0xff] %v448
      %460 = vst [vmem:[#allocation3 + $0x8] sm:$0xff] %v453
    $region65: #{tpu_custom_call.1} parent=1 // pred_fallthru
      _
    %p461 = scmp.ne.s32.totalorder 0, 0
    // Predicated region
    $region66: #{tpu_custom_call.1} parent=1 // pred_check
      %p462 = pneg %p461
    $region67: #{tpu_custom_call.1} parent=1 // pred_check_branch
      %464 = sbr.rel (%p462) target = $region69
    $region68: #{tpu_custom_call.1} parent=1 // pred_region
      %v465 = vld [vmem:[#allocation3] sm:$0xff]
      %v466 = vld [vmem:[#allocation3 + $0x8] sm:$0xff]
      %v467 = vadd.f32 %v465, %v448
      %v468 = vadd.f32 %v466, %v453
      %469 = vst [vmem:[#allocation3] sm:$0xff] %v467
      %470 = vst [vmem:[#allocation3 + $0x8] sm:$0xff] %v468
    $region69: #{tpu_custom_call.1} parent=1 // pred_fallthru
      _
    // Predicated region
    $region70: #{tpu_custom_call.1} parent=1 // pred_check
      %p471 = pneg %p194
    $region71: #{tpu_custom_call.1} parent=1 // pred_check_branch
      %473 = sbr.rel (%p471) target = $region73
    $region72: #{tpu_custom_call.1} parent=1 // pred_region
      %v474 = vld [vmem:[#allocation3] sm:$0xff]
      %v475 = vld [vmem:[#allocation3 + $0x8] sm:$0xff]
      %v476 = vld [vmem:[#allocation15] sm:$0x1]
      %v478 = vlaneseq
      %v479 = vshrl.u32 %v478, 7
      %v480 = vsub.s32 0, %v479
      %v481 = vrot.slane %v476, %v480
      %v483 = vadd.f32 %v474, %v481
      %v484 = vadd.f32 %v475, %v481
      %485 = vst [vmem:[#allocation16] sm:$0xff] %v483
      %486 = vst [vmem:[#allocation16 + $0x8] sm:$0xff] %v484
    $region73: #{tpu_custom_call.1} parent=1 // pred_fallthru
      _
    // Predicated region
    $region74: #{tpu_custom_call.1} parent=1 // pred_check
      _
    $region75: #{tpu_custom_call.1} parent=1 // pred_check_branch
      %488 = sbr.rel (0) target = $region77
    $region76: #{tpu_custom_call.1} parent=1 // pred_region
      %s490 = ssub.s32 256, 256
      %491 = vsyncadd [#allocation6], %s490
      %s492 = sshll.u32 [#allocation16], 4
      %s493 = int_to_ptr.vmem [resolvable:$true] %s492
      %498 = dma.vmem_to_hbm [thread:$0]  %s493, 256, %s7, [#allocation6], 128, 128, 8
    $region77: #{tpu_custom_call.1} parent=1 // pred_fallthru
      _
    // Predicated region
    $region78: #{tpu_custom_call.1} parent=1 // pred_check
      _
    $region79: #{tpu_custom_call.1} parent=1 // pred_check_branch
      %500 = sbr.rel (0) target = $region81
    $region80: #{tpu_custom_call.1} parent=1 // pred_region
      %501 = dma.done [#allocation6], 256
    $region81: #{tpu_custom_call.1} parent=1 // pred_fallthru
      _
    %502 = vsyncpa [#allocation5], 1
    %503 = vsyncpa [#allocation8], 1
    %504 = vsyncpa [#allocation11], 1
    %505 = vsyncpa [#allocation14], 1
    %506 = vsyncpa [#allocation6], 1

</llo_original>
